<compile_context>
chip_gen: v7x
topology: tpu7x:2x2x1
jax: 0.10.0
libtpu: 0.0.40
codegen_flags: <defaults>
</compile_context>

<pallas_src>
import jax
import jax.numpy as jnp
from jax import lax
from jax.experimental import pallas as pl
from jax.experimental.pallas import tpu as pltpu

_LANE = 128
_BLOCK_BYTES = 8 * 1024 * 1024      # HBM bytes per input per pipeline buffer
_CHUNK_ROWS = 1024                  # in-kernel compute chunk (rows)
_VMEM_LIMIT = 48 * 1024 * 1024      # 2 inputs x 2 buffers x 8 MiB + temps


def _pick_tiling(rows, itemsize):
    """Choose (block_rows, chunk_rows, acc_rows, num_blocks) from a byte budget."""
    budget_rows = max(_BLOCK_BYTES // (_LANE * itemsize), 8)
    if rows <= _CHUNK_ROWS:
        # One small block covering all rows exactly (block == full dim is a
        # legal BlockSpec even when rows % 8 != 0).
        block_rows = rows
        chunk_rows = rows
    else:
        chunk_rows = _CHUNK_ROWS
        block_rows = (min(budget_rows, rows) // chunk_rows) * chunk_rows
    num_blocks = pl.cdiv(rows, block_rows)
    if chunk_rows % 32 == 0:
        acc_rows = 32            # 4x shallower accumulation chain than (8,128)
    elif chunk_rows % 8 == 0:
        acc_rows = 8
    else:
        acc_rows = chunk_rows    # tiny / odd row counts
    return block_rows, chunk_rows, acc_rows, num_blocks


def _make_dice_kernel(block_rows, chunk_rows, acc_rows, num_blocks, rows):
    """Kernel closure over static tiling parameters (shapes are static under jit)."""
    assert block_rows % chunk_rows == 0 and chunk_rows % acc_rows == 0
    num_chunks = block_rows // chunk_rows
    last_valid_rows = rows - (num_blocks - 1) * block_rows
    last_is_partial = last_valid_rows < block_rows

    def kernel(x_ref, y_ref, out_ref):
        def make_body(masked):
            def body(c, carry):
                axy, asum = carry
                r = c * chunk_rows
                if not isinstance(r, int):
                    r = pl.multiple_of(r, chunk_rows)
                xv = x_ref[pl.ds(r, chunk_rows), :].astype(jnp.float32)
                yv = y_ref[pl.ds(r, chunk_rows), :].astype(jnp.float32)
                if masked:
                    # Zero Pallas edge-block pad rows (garbage data past rows).
                    ridx = r + lax.broadcasted_iota(jnp.int32, xv.shape, 0)
                    valid = ridx < last_valid_rows
                    xv = jnp.where(valid, xv, 0.0)
                    yv = jnp.where(valid, yv, 0.0)
                # Pure VPU adds; sublane regrouping only, no cross-lane reduce.
                axy = axy + (xv * yv).reshape(-1, acc_rows, _LANE).sum(axis=0)
                asum = asum + (xv + yv).reshape(-1, acc_rows, _LANE).sum(axis=0)
                return axy, asum
            return body

        def accumulate(masked):
            zero = jnp.zeros((acc_rows, _LANE), jnp.float32)
            body = make_body(masked)
            if num_chunks == 1:
                axy, asum = body(0, (zero, zero))
            else:
                axy, asum = lax.fori_loop(0, num_chunks, body, (zero, zero))
            out_ref[0, 0] = axy
            out_ref[0, 1] = asum

        if not last_is_partial:
            accumulate(False)
        else:
            i = pl.program_id(0)

            @pl.when(i < num_blocks - 1)
            def _full_blocks():
                accumulate(False)

            @pl.when(i == num_blocks - 1)
            def _edge_block():
                accumulate(True)

    return kernel


@jax.jit
def dice_loss(x, y):
    """Dice loss: 1 - (2*sum(x*y) + 0.99) / (sum(x) + sum(y) + 0.99)."""
    n = x.size
    xf = x.reshape(-1)      # contiguous reshape: no HBM copy
    yf = y.reshape(-1)
    rows = n // _LANE
    rem = n - rows * _LANE

    sxy = jnp.float32(0.0)
    ssum = jnp.float32(0.0)

    if rows > 0:
        n_main = rows * _LANE
        if rem:
            # TODO(synk): this slice copies the first rows*128 elements once on
            # ragged sizes; avoiding it would need a manual-DMA 1-D kernel.
            xm = xf[:n_main]
            ym = yf[:n_main]
        else:
            xm = xf
            ym = yf
        x2 = xm.reshape(rows, _LANE)
        y2 = ym.reshape(rows, _LANE)

        itemsize = max(x.dtype.itemsize, y.dtype.itemsize)
        block_rows, chunk_rows, acc_rows, num_blocks = _pick_tiling(rows, itemsize)
        kernel = _make_dice_kernel(block_rows, chunk_rows, acc_rows, num_blocks, rows)

        out_bytes = num_blocks * 2 * acc_rows * _LANE * 4
        cost = pl.CostEstimate(
            flops=3 * n_main,
            transcendentals=0,
            bytes_accessed=n_main * (x.dtype.itemsize + y.dtype.itemsize) + out_bytes,
        )

        partials = pl.pallas_call(
            kernel,
            out_shape=jax.ShapeDtypeStruct(
                (num_blocks, 2, acc_rows, _LANE), jnp.float32),
            grid=(num_blocks,),
            in_specs=[
                pl.BlockSpec((block_rows, _LANE), lambda i: (i, 0)),
                pl.BlockSpec((block_rows, _LANE), lambda i: (i, 0)),
            ],
            out_specs=pl.BlockSpec(
                (1, 2, acc_rows, _LANE), lambda i: (i, 0, 0, 0)),
            compiler_params=pltpu.CompilerParams(
                dimension_semantics=("parallel",),   # independent blocks: uses both v7x TCs
                vmem_limit_bytes=_VMEM_LIMIT,
            ),
            cost_estimate=cost,
        )(x2, y2)

        sxy = sxy + jnp.sum(partials[:, 0])
        ssum = ssum + jnp.sum(partials[:, 1])

    if rem:
        # <128-element ragged tail handled directly in JAX (no full-array pad).
        xt = xf[rows * _LANE:].astype(jnp.float32)
        yt = yf[rows * _LANE:].astype(jnp.float32)
        sxy = sxy + jnp.sum(xt * yt)
        ssum = ssum + jnp.sum(xt) + jnp.sum(yt)

    incr = 2.0 * sxy + 0.99
    union = ssum + 0.99
    return (1.0 - incr / union).astype(jnp.float32)


def dice_loss_module(x, y):
    """Mirrors DiceLoss.forward, including the batch-size check."""
    if x.shape[0] != y.shape[0]:
        print("Predict size != target size")
        return None
    return dice_loss(x, y)


def _reference(x, y):
    xf = x.astype(jnp.float32)
    yf = y.astype(jnp.float32)
    incr = 2.0 * jnp.sum(xf * yf) + 0.99
    union = jnp.sum(xf) + jnp.sum(yf) + 0.99
    return 1.0 - incr / union


if __name__ == "__main__":
    key = jax.random.PRNGKey(0)
    kx, ky = jax.random.split(key)

    # 1) Typical NCHW inputs (single full block, no masking).
    x = jax.random.uniform(kx, (2, 4, 16, 16), dtype=jnp.float32)
    y = (jax.random.uniform(ky, (2, 4, 16, 16), dtype=jnp.float32) > 0.5).astype(
        jnp.float32)
    loss = jax.block_until_ready(dice_loss_module(x, y))
    ref = _reference(x, y)
    assert jnp.allclose(loss, ref, rtol=1e-5, atol=1e-5), (loss, ref)

    # 2) Ragged size (n % 128 != 0): exercises the wrapper tail path.
    kx2, ky2 = jax.random.split(jax.random.PRNGKey(1))
    x2 = jax.random.uniform(kx2, (2, 3, 17, 16), dtype=jnp.float32)
    y2 = (jax.random.uniform(ky2, (2, 3, 17, 16), dtype=jnp.float32) > 0.5).astype(
        jnp.float32)
    loss2 = jax.block_until_ready(dice_loss_module(x2, y2))
    ref2 = _reference(x2, y2)
    assert jnp.allclose(loss2, ref2, rtol=1e-5, atol=1e-5), (loss2, ref2)

    # 3) Multi-block grid with a partial (masked) last block + ragged tail.
    kx3, ky3 = jax.random.split(jax.random.PRNGKey(2))
    x3 = jax.random.uniform(kx3, (6, 100, 223), dtype=jnp.float32)
    y3 = (jax.random.uniform(ky3, (6, 100, 223), dtype=jnp.float32) > 0.5).astype(
        jnp.float32)
    loss3 = jax.block_until_ready(dice_loss_module(x3, y3))
    ref3 = _reference(x3, y3)
    assert jnp.allclose(loss3, ref3, rtol=1e-5, atol=1e-5), (loss3, ref3)

    # 4) bf16 inputs: exercises itemsize-derived block sizing + in-kernel upcast.
    x4 = x.astype(jnp.bfloat16)
    y4 = y.astype(jnp.bfloat16)
    loss4 = jax.block_until_ready(dice_loss_module(x4, y4))
    ref4 = _reference(x4, y4)
    assert jnp.allclose(loss4, ref4, rtol=1e-5, atol=1e-5), (loss4, ref4)

    print("KERNEL_OK")
</pallas_src>

<mosaic_0001>
module attributes {stable_mosaic.version = 11 : i64} {
  func.func @kernel(%arg0: i32, %arg1: memref<16x128xf32, #tpu.memory_space<vmem>>, %arg2: memref<16x128xf32, #tpu.memory_space<vmem>>, %arg3: memref<1x2x8x128xf32, #tpu.memory_space<vmem>>) attributes {dimension_semantics = [#tpu.dimension_semantics<parallel>], iteration_bounds = array<i64: 1>, scalar_prefetch = 0 : i64, scratch_operands = 0 : i64, tpu.core_type = #tpu.core_type<tc>, window_params = [{transform_indices = @transform_0, window_bounds = array<i64: 16, 128>}, {transform_indices = @transform_1, window_bounds = array<i64: 16, 128>}, {transform_indices = @transform_2, window_bounds = array<i64: 1, 2, 8, 128>}]} {
    %cst = arith.constant 0.000000e+00 : f32
    %0 = vector.broadcast %cst : f32 to vector<8x128xf32>
    %c0 = arith.constant 0 : index
    %c0_0 = arith.constant 0 : index
    %1 = vector.load %arg1[%c0, %c0_0] : memref<16x128xf32, #tpu.memory_space<vmem>>, vector<16x128xf32>
    %c0_1 = arith.constant 0 : index
    %c0_2 = arith.constant 0 : index
    %2 = vector.load %arg2[%c0_1, %c0_2] : memref<16x128xf32, #tpu.memory_space<vmem>>, vector<16x128xf32>
    %3 = arith.mulf %1, %2 : vector<16x128xf32>
    %4 = vector.shape_cast %3 : vector<16x128xf32> to vector<2x8x128xf32>
    %cst_3 = arith.constant dense<0.000000e+00> : vector<8x128xf32>
    %5 = vector.multi_reduction <add>, %4, %cst_3 [0] : vector<2x8x128xf32> to vector<8x128xf32>
    %6 = arith.addf %0, %5 : vector<8x128xf32>
    %7 = arith.addf %1, %2 : vector<16x128xf32>
    %8 = vector.shape_cast %7 : vector<16x128xf32> to vector<2x8x128xf32>
    %cst_4 = arith.constant dense<0.000000e+00> : vector<8x128xf32>
    %9 = vector.multi_reduction <add>, %8, %cst_4 [0] : vector<2x8x128xf32> to vector<8x128xf32>
    %10 = arith.addf %0, %9 : vector<8x128xf32>
    %c0_5 = arith.constant 0 : index
    %c0_6 = arith.constant 0 : index
    %c0_7 = arith.constant 0 : index
    %c0_8 = arith.constant 0 : index
    %11 = vector.load %arg3[%c0_5, %c0_6, %c0_7, %c0_8] : memref<1x2x8x128xf32, #tpu.memory_space<vmem>>, vector<1x1x8x128xf32>
    %12 = vector.shape_cast %11 : vector<1x1x8x128xf32> to vector<8x128xf32>
    %13 = vector.shape_cast %6 : vector<8x128xf32> to vector<1x1x8x128xf32>
    tpu.vector_store %arg3[%c0_5, %c0_6, %c0_7, %c0_8], %13 {strides = array<i32>} : memref<1x2x8x128xf32, #tpu.memory_space<vmem>>, vector<1x1x8x128xf32>,
    %c0_9 = arith.constant 0 : index
    %c1 = arith.constant 1 : index
    %c0_10 = arith.constant 0 : index
    %c0_11 = arith.constant 0 : index
    %14 = vector.load %arg3[%c0_9, %c1, %c0_10, %c0_11] : memref<1x2x8x128xf32, #tpu.memory_space<vmem>>, vector<1x1x8x128xf32>
    %15 = vector.shape_cast %14 : vector<1x1x8x128xf32> to vector<8x128xf32>
    %16 = vector.shape_cast %10 : vector<8x128xf32> to vector<1x1x8x128xf32>
    tpu.vector_store %arg3[%c0_9, %c1, %c0_10, %c0_11], %16 {strides = array<i32>} : memref<1x2x8x128xf32, #tpu.memory_space<vmem>>, vector<1x1x8x128xf32>,
    return
  }
  func.func @transform_0(%arg0: i32) -> (i32, i32) {
    %c0_i32 = arith.constant 0 : i32
    %c0_i32_0 = arith.constant 0 : i32
    return %arg0, %c0_i32 : i32, i32
  }
  func.func @transform_1(%arg0: i32) -> (i32, i32) {
    %c0_i32 = arith.constant 0 : i32
    %c0_i32_0 = arith.constant 0 : i32
    return %arg0, %c0_i32 : i32, i32
  }
  func.func @transform_2(%arg0: i32) -> (i32, i32, i32, i32) {
    %c0_i32 = arith.constant 0 : i32
    %c0_i32_0 = arith.constant 0 : i32
    %c0_i32_1 = arith.constant 0 : i32
    %c0_i32_2 = arith.constant 0 : i32
    return %arg0, %c0_i32, %c0_i32_0, %c0_i32_1 : i32, i32, i32, i32
  }
}

</mosaic_0001>

<llo_original>
// kernel: dice_loss.1
$region0: #{dice_loss.1}
  #allocation0 [shape = 'u32[]', space=smem, size = 0x4, offset = 0x4, fixed_abs, tag = 'smem constant byte address 0x4 - core index']
  #allocation1 [shape = 'u32[144,128]{1,0:T(1,128)}', space=vmem, size = 0x12000, scoped, tag = 'internal scratch']
  %s0 = inlined_call_operand.vmem [shape: f32[16,128], index: 0, kind: input, shape index: {}]
  %s1 = inlined_call_operand.vmem [shape: f32[16,128], index: 1, kind: input, shape index: {}]
  %s2 = inlined_call_operand.vmem [shape: f32[1,2,8,128], index: 2, kind: output, shape index: {}]
  %s3 = sld [smem:[#allocation0]]
  $region18: #{dice_loss.1} parent=0
    _
  %s5 = ssub.s32 1, %s3
  %s6 = scalar_select 0, %s5, %s3
  // Predicated region
  $region2: #{dice_loss.1} parent=0 // pred_check
    _
  $region3: #{dice_loss.1} parent=0 // pred_check_branch
    %8 = sbr.rel (0) target = $region5
  $region4: #{dice_loss.1} parent=0 // pred_region
    _
  $region5: #{dice_loss.1} parent=0 // pred_fallthru
    _
  // Predicated region
  $region6: #{dice_loss.1} parent=0 // pred_check
    _
  $region7: #{dice_loss.1} parent=0 // pred_check_branch
    %10 = sbr.rel (0) target = $region9
  $region8: #{dice_loss.1} parent=0 // pred_region
    _
  $region9: #{dice_loss.1} parent=0 // pred_fallthru
    _
  %v11 = vld [vmem:[%s0] sm:$0xff]
  %v12 = vld [vmem:[%s0 + $0x8] sm:$0xff]
  %v13 = vld [vmem:[%s1] sm:$0xff]
  %v14 = vld [vmem:[%s1 + $0x8] sm:$0xff]
  %v15 = vmul.f32 %v11, %v13
  %v16 = vmul.f32 %v12, %v14
  %v17 = vadd.f32 %v15, %v16
  %v18 = vadd.f32 %v17, 0.0
  %v19 = vadd.f32 %v11, %v13
  %v20 = vadd.f32 %v12, %v14
  %v21 = vadd.f32 %v19, %v20
  %v22 = vadd.f32 %v21, 0.0
  %23 = vst [vmem:[%s2] sm:$0xff] %v18
  %s24 = scalar_lea.vmem %s2, 8
  %25 = vst [vmem:[%s24] sm:$0xff] %v22
  // Predicated region
  $region10: #{dice_loss.1} parent=0 // pred_check
    _
  $region11: #{dice_loss.1} parent=0 // pred_check_branch
    %27 = sbr.rel (0) target = $region13
  $region12: #{dice_loss.1} parent=0 // pred_region
    _
  $region13: #{dice_loss.1} parent=0 // pred_fallthru
    _
  // Predicated region
  $region14: #{dice_loss.1} parent=0 // pred_check
    _
  $region15: #{dice_loss.1} parent=0 // pred_check_branch
    %29 = sbr.rel (0) target = $region17
  $region16: #{dice_loss.1} parent=0 // pred_region
    _
  $region17: #{dice_loss.1} parent=0 // pred_fallthru
    _

</llo_original>
